<compile_context>
chip_gen: v7x
topology: tpu7x:2x2x1
jax: 0.10.0
libtpu: 0.0.40
codegen_flags: <defaults>
</compile_context>

<pallas_src>
import functools

import jax
import jax.numpy as jnp
from jax.experimental import pallas as pl
from jax.experimental.pallas import tpu as pltpu


# --------------------------------------------------------------------------
# Fused forward kernel
#   h     = relu(x @ W_enc + b_enc)
#   y     = h @ [W_dec | W_proj] + [b_dec | b_proj]
#   recon = sigmoid(y[:, :raw_pad])        z = y[:, raw_pad:]
#   (last grid step) S = exp_cosine_sim(z, z) -> masked contrastive loss/weight
# --------------------------------------------------------------------------
def _fused_forward_kernel(m1c_ref, m2c_ref, m1r_ref, m2r_ref, valid_ref,
                          x_ref, we_ref, be_ref, wc_ref, bc_ref,
                          recon_ref, stats_ref, z_scratch,
                          *, block_b, raw_pad, alpha, gamma, beta, r, with_loss):
    i = pl.program_id(0)

    # ---- encoder / decoder / projection (one fused MXU path per batch tile) ----
    x = x_ref[...]                                                   # (Bt, raw_pad)
    h = jnp.dot(x, we_ref[...], preferred_element_type=jnp.float32) + be_ref[...]
    h = jnp.maximum(h, 0.0)                                          # ReLU
    y = jnp.dot(h, wc_ref[...], preferred_element_type=jnp.float32) + bc_ref[...]
    recon_ref[...] = jax.nn.sigmoid(y[:, :raw_pad])                  # Sigmoid decoder

    if with_loss:
        z_tile = y[:, raw_pad:]                                      # (Bt, proj_pad)
        row0 = pl.multiple_of(i * block_b, block_b)
        z_scratch[pl.ds(row0, block_b), :] = z_tile                  # stash z for the loss

    @pl.when(i == pl.num_programs(0) - 1)
    def _finalize():
        if not with_loss:
            stats_ref[...] = jnp.zeros_like(stats_ref)
            return

        eps = 1e-15
        z = z_scratch[...]                                           # (B_pad, proj_pad)
        m1c = m1c_ref[...]                                           # (B_pad, 1) group-1 mask
        m2c = m2c_ref[...]                                           # (B_pad, 1) group-2 mask
        m1r = m1r_ref[...]                                           # (1, B_pad)
        m2r = m2r_ref[...]                                           # (1, B_pad)
        n1 = jnp.sum(m1c)
        n2 = jnp.sum(m2c)

        # Gram matrix z @ z.T without materializing z.T (contract dim 1 of both).
        g = jax.lax.dot_general(z, z, (((1,), (1,)), ((), ())),
                                preferred_element_type=jnp.float32)  # (B_pad, B_pad)
        bp = g.shape[0]
        ii = jax.lax.broadcasted_iota(jnp.int32, (bp, bp), 0)
        jj = jax.lax.broadcasted_iota(jnp.int32, (bp, bp), 1)
        diag = jnp.where(ii == jj, g, 0.0)                           # |z|^2 on the diagonal
        nsq_col = jnp.sum(diag, axis=1, keepdims=True)               # (B_pad, 1)
        nsq_row = jnp.sum(diag, axis=0, keepdims=True)               # (1, B_pad)
        denom = jnp.maximum(jnp.sqrt(nsq_col) * jnp.sqrt(nsq_row), eps)
        S = jnp.exp(g / denom)                                       # exp_cosine_sim(z, z)

        # masked group reductions (padded / other-label rows have zero masks)
        r1 = jnp.sum(m1c * S, axis=0, keepdims=True)                 # sum_{i in g1} S[i, j]
        r2 = jnp.sum(m2c * S, axis=0, keepdims=True)
        sum11 = jnp.sum(r1 * m1r)                                    # sum over g1 x g1
        sum22 = jnp.sum(r2 * m2r)                                    # sum over g2 x g2
        neg = sum11 + gamma * sum22

        if beta != 0.0:   # module hard-codes beta = 0; kept for fidelity
            valid = valid_ref[...]
            nvalid = jnp.maximum(jnp.sum(valid), 1.0)
            mean_z = jnp.sum(valid * z, axis=0, keepdims=True) / nvalid
            wm = jnp.sqrt(jnp.sum(mean_z * mean_z))
            gz = jnp.sum(z * mean_z, axis=1, keepdims=True)
            ecs = jnp.exp(gz / jnp.maximum(jnp.sqrt(nsq_col) * wm, eps))
            centrality = jnp.sum(valid * jnp.maximum(2.0 - r * r - 2.0 * ecs, 0.0))
            extra = beta * centrality
        else:
            extra = 0.0

        n1s = jnp.maximum(n1, 1.0)
        n2s = jnp.maximum(n2, 1.0)
        pos = r1 / n1s                                               # mean over group-1 rows
        log_term = jnp.log(pos / (extra + neg))                      # finite: S > 0 everywhere
        contra = -jnp.sum(log_term * m2r) / n2s                      # mean over group-2 cols

        mean11 = sum11 / jnp.maximum(n1 * n1, 1.0)
        mean22 = sum22 / jnp.maximum(n2 * n2, 1.0)
        weight = mean11 / (mean11 + gamma * mean22)

        empty = jnp.logical_or(n1 == 0.0, n2 == 0.0)                 # reference: loss 0 if a group empty
        contra = jnp.where(empty, 0.0, contra) * alpha               # contrastive_loss scales by alpha
        weight = jnp.where(empty, 0.0, weight)

        lane = jax.lax.broadcasted_iota(jnp.int32, (1, 128), 1)      # lane-dense scalar slab
        stats_ref[...] = jnp.where(lane == 0, contra,
                                   jnp.where(lane == 1, weight, 0.0))


def _round_up(n, m):
    return ((n + m - 1) // m) * m


def autoencoder_forward(x, params, group_label=None, *,
                        alpha=0.5, gamma=1.0, beta=0.0, r=1.0, block_b=128):
    """Mirrors Autoencoder.forward: returns (reconstruction, alpha*contra_loss, weight)."""
    B = x.shape[0]
    xf = x.reshape(B, -1).astype(jnp.float32)                        # x.view(x.size(0), -1)
    raw_dim = xf.shape[1]
    hidden = params["w_enc"].shape[1]
    proj_dim = params["w_proj"].shape[1]

    # lane-dense padding (multiples of 128) and batch tiling (multiple of 8)
    raw_pad = _round_up(raw_dim, 128)
    hid_pad = _round_up(hidden, 128)
    proj_pad = _round_up(proj_dim, 128)
    bt = min(_round_up(B, 8), block_b)
    b_pad = _round_up(B, bt)
    n_tiles = b_pad // bt
    out_pad = raw_pad + proj_pad

    def pad2(a, rows, cols):
        a = a.astype(jnp.float32)
        return jnp.pad(a, ((0, rows - a.shape[0]), (0, cols - a.shape[1])))

    x_p = pad2(xf, b_pad, raw_pad)
    we_p = pad2(params["w_enc"], raw_pad, hid_pad)
    be_p = pad2(params["b_enc"], 1, hid_pad)
    # decoder + projection fused into a single matmul operand / bias
    wc_p = jnp.concatenate([pad2(params["w_dec"], hid_pad, raw_pad),
                            pad2(params["w_proj"], hid_pad, proj_pad)], axis=1)
    bc_p = jnp.concatenate([pad2(params["b_dec"], 1, raw_pad),
                            pad2(params["b_proj"], 1, proj_pad)], axis=1)

    with_loss = (alpha != 0) and (group_label is not None)
    if with_loss:
        gl = group_label.reshape(-1).astype(jnp.int32)
        m1 = (gl == 0).astype(jnp.float32)
        m2 = (gl == 1).astype(jnp.float32)
    else:
        m1 = jnp.zeros((B,), jnp.float32)
        m2 = jnp.zeros((B,), jnp.float32)
    valid = jnp.ones((B,), jnp.float32)
    m1 = jnp.pad(m1, (0, b_pad - B))
    m2 = jnp.pad(m2, (0, b_pad - B))
    valid = jnp.pad(valid, (0, b_pad - B))
    m1c, m2c, validc = m1[:, None], m2[:, None], valid[:, None]      # column masks
    m1r, m2r = m1[None, :], m2[None, :]                              # row masks (no in-kernel transpose)

    kernel = functools.partial(
        _fused_forward_kernel, block_b=bt, raw_pad=raw_pad,
        alpha=float(alpha), gamma=float(gamma), beta=float(beta), r=float(r),
        with_loss=with_loss)

    recon_p, stats = pl.pallas_call(
        kernel,
        grid=(n_tiles,),
        in_specs=[
            pl.BlockSpec((b_pad, 1), lambda i: (0, 0)),              # m1 (column)
            pl.BlockSpec((b_pad, 1), lambda i: (0, 0)),              # m2 (column)
            pl.BlockSpec((1, b_pad), lambda i: (0, 0)),              # m1 (row)
            pl.BlockSpec((1, b_pad), lambda i: (0, 0)),              # m2 (row)
            pl.BlockSpec((b_pad, 1), lambda i: (0, 0)),              # valid-row mask
            pl.BlockSpec((bt, raw_pad), lambda i: (i, 0)),           # x tile
            pl.BlockSpec((raw_pad, hid_pad), lambda i: (0, 0)),      # W_enc (VMEM-resident)
            pl.BlockSpec((1, hid_pad), lambda i: (0, 0)),            # b_enc
            pl.BlockSpec((hid_pad, out_pad), lambda i: (0, 0)),      # [W_dec | W_proj]
            pl.BlockSpec((1, out_pad), lambda i: (0, 0)),            # [b_dec | b_proj]
        ],
        out_specs=(
            pl.BlockSpec((bt, raw_pad), lambda i: (i, 0)),           # reconstruction tile
            pl.BlockSpec((1, 128), lambda i: (0, 0)),                # [loss, weight, 0...] slab
        ),
        out_shape=(
            jax.ShapeDtypeStruct((b_pad, raw_pad), jnp.float32),
            jax.ShapeDtypeStruct((1, 128), jnp.float32),
        ),
        scratch_shapes=[pltpu.VMEM((b_pad, proj_pad), jnp.float32)], # z, resident across grid steps
        compiler_params=pltpu.CompilerParams(
            dimension_semantics=("arbitrary",)),                     # last step reads full z scratch
    )(m1c, m2c, m1r, m2r, validc, x_p, we_p, be_p, wc_p, bc_p)

    recon = recon_p[:B, :raw_dim]
    contra_loss = stats[0, 0]                                        # already alpha-scaled (contrastive_loss)
    weight = stats[0, 1]
    # forward() multiplies the (already alpha-scaled) contrastive loss by alpha again.
    return recon, jnp.float32(alpha) * contra_loss, weight


def init_params(key, raw_dim, hidden_dim, proj_dim=25):
    """Deterministic nn.Linear-style init (uniform +-1/sqrt(fan_in)), weights stored [in, out]."""
    ks = jax.random.split(key, 6)

    def lin(kw, kb, fan_in, fan_out):
        bound = 1.0 / jnp.sqrt(jnp.float32(fan_in))
        w = jax.random.uniform(kw, (fan_in, fan_out), jnp.float32, -bound, bound)
        b = jax.random.uniform(kb, (1, fan_out), jnp.float32, -bound, bound)
        return w, b

    w_enc, b_enc = lin(ks[0], ks[1], raw_dim, hidden_dim)
    w_dec, b_dec = lin(ks[2], ks[3], hidden_dim, raw_dim)
    w_proj, b_proj = lin(ks[4], ks[5], hidden_dim, proj_dim)
    return dict(w_enc=w_enc, b_enc=b_enc, w_dec=w_dec, b_dec=b_dec,
                w_proj=w_proj, b_proj=b_proj)


# --------------------------------------------------------------------------
# Pure-JAX reference of the PyTorch module (for correctness checking only).
# --------------------------------------------------------------------------
def _dot_hi(a, b):
    return jnp.dot(a, b, precision=jax.lax.Precision.HIGHEST)


def _exp_cosine_sim(a, b, eps=1e-15):
    wa = jnp.sqrt(jnp.sum(a * a, axis=1, keepdims=True))
    wb = jnp.sqrt(jnp.sum(b * b, axis=1, keepdims=True))
    return jnp.exp(_dot_hi(a, b.T) / jnp.maximum(wa * wb.T, eps))


def _reference_forward(x, params, group_label, *, alpha, gamma, beta=0.0, r=1.0):
    B = x.shape[0]
    xf = x.reshape(B, -1).astype(jnp.float32)
    h = jnp.maximum(_dot_hi(xf, params["w_enc"]) + params["b_enc"], 0.0)
    recon = jax.nn.sigmoid(_dot_hi(h, params["w_dec"]) + params["b_dec"])
    if alpha != 0 and group_label is not None:
        z = _dot_hi(h, params["w_proj"]) + params["b_proj"]
        g1 = z[group_label == 0]
        g2 = z[group_label == 1]
        if g1.shape[0] == 0 or g2.shape[0] == 0:
            contra, weight = jnp.float32(0.0), jnp.float32(0.0)
        else:
            pos = _exp_cosine_sim(g1, g2).mean(axis=0)
            mean_z = z.mean(axis=0, keepdims=True)
            centrality = jnp.maximum(
                2.0 - r ** 2 - 2.0 * _exp_cosine_sim(z, mean_z), 0.0).sum()
            neg = _exp_cosine_sim(g1, g1).sum() + gamma * _exp_cosine_sim(g2, g2).sum()
            contra = -jnp.mean(jnp.log(pos / (beta * centrality + neg)))
            m11 = _exp_cosine_sim(g1, g1).mean()
            m22 = _exp_cosine_sim(g2, g2).mean()
            weight = m11 / (m11 + gamma * m22)
        contra = contra * alpha            # contrastive_loss returns alpha * loss
    else:
        contra, weight = jnp.float32(0.0), jnp.float32(0.0)
    return recon, alpha * contra, weight   # forward multiplies by alpha again


if __name__ == "__main__":
    key = jax.random.PRNGKey(0)
    k_x, k_p = jax.random.split(key)

    # Small shapes consistent with the module: raw_dim = C*H*W, hidden_dim, proj=25.
    B, C, H, W = 16, 1, 8, 8
    raw_dim, hidden_dim = C * H * W, 32
    alpha, gamma = 0.5, 1.0

    x = jax.random.uniform(k_x, (B, C, H, W), jnp.float32)           # NCHW input
    group_label = jnp.array([0] * (B // 2) + [1] * (B // 2), dtype=jnp.int32)
    params = init_params(k_p, raw_dim, hidden_dim)

    # block_b=8 -> 2 grid steps at B=16, exercising the tiled batch path.
    fwd = jax.jit(functools.partial(autoencoder_forward,
                                    alpha=alpha, gamma=gamma, block_b=8))
    recon, loss, weight = fwd(x, params, group_label)
    jax.block_until_ready((recon, loss, weight))

    ref_recon, ref_loss, ref_weight = _reference_forward(
        x, params, group_label, alpha=alpha, gamma=gamma)

    assert recon.shape == (B, raw_dim)
    assert jnp.all(jnp.isfinite(recon)) and jnp.isfinite(loss) and jnp.isfinite(weight)
    assert jnp.allclose(recon, ref_recon, rtol=2e-3, atol=2e-3)
    assert jnp.allclose(loss, ref_loss, rtol=2e-3, atol=2e-3)
    assert jnp.allclose(weight, ref_weight, rtol=2e-3, atol=2e-3)
    # TODO(synk): contrastive_loss_entropy_form (nn.CrossEntropyLoss path) is unused by forward() and not ported.
    print("KERNEL_OK")
</pallas_src>

<mosaic_0001>
module attributes {stable_mosaic.version = 11 : i64} {
  func.func @_fused_forward_kernel(%arg0: i32, %arg1: memref<16x1xf32, #tpu.memory_space<vmem>>, %arg2: memref<16x1xf32, #tpu.memory_space<vmem>>, %arg3: memref<1x16xf32, #tpu.memory_space<vmem>>, %arg4: memref<1x16xf32, #tpu.memory_space<vmem>>, %arg5: memref<16x1xf32, #tpu.memory_space<vmem>>, %arg6: memref<8x128xf32, #tpu.memory_space<vmem>>, %arg7: memref<128x128xf32, #tpu.memory_space<vmem>>, %arg8: memref<1x128xf32, #tpu.memory_space<vmem>>, %arg9: memref<128x256xf32, #tpu.memory_space<vmem>>, %arg10: memref<1x256xf32, #tpu.memory_space<vmem>>, %arg11: memref<8x128xf32, #tpu.memory_space<vmem>>, %arg12: memref<1x128xf32, #tpu.memory_space<vmem>>, %arg13: memref<16x128xf32, #tpu.memory_space<vmem>>) attributes {dimension_semantics = [#tpu.dimension_semantics<arbitrary>], iteration_bounds = array<i64: 2>, scalar_prefetch = 0 : i64, scratch_operands = 1 : i64, tpu.core_type = #tpu.core_type<tc>, window_params = [{pipeline_mode = #tpu.pipeline_mode<synchronous>, transform_indices = @transform_0, window_bounds = array<i64: 16, 1>}, {pipeline_mode = #tpu.pipeline_mode<synchronous>, transform_indices = @transform_1, window_bounds = array<i64: 16, 1>}, {pipeline_mode = #tpu.pipeline_mode<synchronous>, transform_indices = @transform_2, window_bounds = array<i64: 1, 16>}, {pipeline_mode = #tpu.pipeline_mode<synchronous>, transform_indices = @transform_3, window_bounds = array<i64: 1, 16>}, {pipeline_mode = #tpu.pipeline_mode<synchronous>, transform_indices = @transform_4, window_bounds = array<i64: 16, 1>}, {transform_indices = @transform_5, window_bounds = array<i64: 8, 128>}, {pipeline_mode = #tpu.pipeline_mode<synchronous>, transform_indices = @transform_6, window_bounds = array<i64: 128, 128>}, {pipeline_mode = #tpu.pipeline_mode<synchronous>, transform_indices = @transform_7, window_bounds = array<i64: 1, 128>}, {pipeline_mode = #tpu.pipeline_mode<synchronous>, transform_indices = @transform_8, window_bounds = array<i64: 128, 256>}, {pipeline_mode = #tpu.pipeline_mode<synchronous>, transform_indices = @transform_9, window_bounds = array<i64: 1, 256>}, {transform_indices = @transform_10, window_bounds = array<i64: 8, 128>}, {pipeline_mode = #tpu.pipeline_mode<synchronous>, transform_indices = @transform_11, window_bounds = array<i64: 1, 128>}]} {
    %c0 = arith.constant 0 : index
    %c0_0 = arith.constant 0 : index
    %0 = vector.load %arg6[%c0, %c0_0] : memref<8x128xf32, #tpu.memory_space<vmem>>, vector<8x128xf32>
    %c0_1 = arith.constant 0 : index
    %c0_2 = arith.constant 0 : index
    %1 = vector.load %arg7[%c0_1, %c0_2] : memref<128x128xf32, #tpu.memory_space<vmem>>, vector<128x128xf32>
    %cst = arith.constant dense<0.000000e+00> : vector<8x128xf32>
    %2 = tpu.matmul %0, %1, %cst {dimension_numbers = #tpu.dot_dimension_numbers<[1], [0], [0], [1], [0, 0, 1, 1], [], []>} : vector<8x128xf32>, vector<128x128xf32>, vector<8x128xf32> -> vector<8x128xf32>
    %c0_3 = arith.constant 0 : index
    %c0_4 = arith.constant 0 : index
    %3 = vector.load %arg8[%c0_3, %c0_4] : memref<1x128xf32, #tpu.memory_space<vmem>>, vector<1x128xf32>
    %4 = vector.broadcast %3 : vector<1x128xf32> to vector<8x128xf32>
    %5 = arith.addf %2, %4 : vector<8x128xf32>
    %cst_5 = arith.constant 0.000000e+00 : f32
    %6 = vector.broadcast %cst_5 : f32 to vector<8x128xf32>
    %7 = arith.maximumf %5, %6 : vector<8x128xf32>
    %c0_6 = arith.constant 0 : index
    %c0_7 = arith.constant 0 : index
    %8 = vector.load %arg9[%c0_6, %c0_7] : memref<128x256xf32, #tpu.memory_space<vmem>>, vector<128x256xf32>
    %cst_8 = arith.constant dense<0.000000e+00> : vector<8x256xf32>
    %9 = tpu.matmul %7, %8, %cst_8 {dimension_numbers = #tpu.dot_dimension_numbers<[1], [0], [0], [1], [0, 0, 1, 1], [], []>} : vector<8x128xf32>, vector<128x256xf32>, vector<8x256xf32> -> vector<8x256xf32>
    %c0_9 = arith.constant 0 : index
    %c0_10 = arith.constant 0 : index
    %10 = vector.load %arg10[%c0_9, %c0_10] : memref<1x256xf32, #tpu.memory_space<vmem>>, vector<1x256xf32>
    %11 = vector.broadcast %10 : vector<1x256xf32> to vector<8x256xf32>
    %12 = arith.addf %9, %11 : vector<8x256xf32>
    %13 = vector.extract_strided_slice %12 {offsets = [0, 0], sizes = [8, 128], strides = [1, 1]} : vector<8x256xf32> to vector<8x128xf32>
    %14 = arith.negf %13 : vector<8x128xf32>
    %15 = math.exp %14 : vector<8x128xf32>
    %cst_11 = arith.constant 1.000000e+00 : f32
    %16 = vector.broadcast %cst_11 : f32 to vector<8x128xf32>
    %17 = arith.addf %16, %15 : vector<8x128xf32>
    %18 = arith.divf %16, %17 : vector<8x128xf32>
    %c0_12 = arith.constant 0 : index
    %c0_13 = arith.constant 0 : index
    %19 = vector.load %arg11[%c0_12, %c0_13] : memref<8x128xf32, #tpu.memory_space<vmem>>, vector<8x128xf32>
    tpu.vector_store %arg11[%c0_12, %c0_13], %18 {strides = array<i32>} : memref<8x128xf32, #tpu.memory_space<vmem>>, vector<8x128xf32>,
    %20 = vector.extract_strided_slice %12 {offsets = [0, 128], sizes = [8, 128], strides = [1, 1]} : vector<8x256xf32> to vector<8x128xf32>
    %c8_i32 = arith.constant 8 : i32
    %21 = arith.muli %arg0, %c8_i32 : i32
    %22 = tpu.assume_multiple %21, 8 : i32
    %23 = arith.index_cast %22 : i32 to index
    %c0_14 = arith.constant 0 : index
    %24 = vector.load %arg13[%23, %c0_14] : memref<16x128xf32, #tpu.memory_space<vmem>>, vector<8x128xf32>
    tpu.vector_store %arg13[%23, %c0_14], %20 {strides = array<i32>} : memref<16x128xf32, #tpu.memory_space<vmem>>, vector<8x128xf32>,
    %c1_i32 = arith.constant 1 : i32
    %25 = arith.cmpi eq, %arg0, %c1_i32 : i32
    %26 = arith.extui %25 : i1 to i32
    %c0_i32 = arith.constant 0 : i32
    %27 = arith.cmpi ne, %26, %c0_i32 : i32
    scf.if %27 {
      %c0_15 = arith.constant 0 : index
      %c0_16 = arith.constant 0 : index
      %28 = vector.load %arg13[%c0_15, %c0_16] : memref<16x128xf32, #tpu.memory_space<vmem>>, vector<16x128xf32>
      %c0_17 = arith.constant 0 : index
      %c0_18 = arith.constant 0 : index
      %29 = vector.load %arg1[%c0_17, %c0_18] : memref<16x1xf32, #tpu.memory_space<vmem>>, vector<16x1xf32>
      %c0_19 = arith.constant 0 : index
      %c0_20 = arith.constant 0 : index
      %30 = vector.load %arg2[%c0_19, %c0_20] : memref<16x1xf32, #tpu.memory_space<vmem>>, vector<16x1xf32>
      %c0_21 = arith.constant 0 : index
      %c0_22 = arith.constant 0 : index
      %31 = vector.load %arg3[%c0_21, %c0_22] : memref<1x16xf32, #tpu.memory_space<vmem>>, vector<1x16xf32>
      %c0_23 = arith.constant 0 : index
      %c0_24 = arith.constant 0 : index
      %32 = vector.load %arg4[%c0_23, %c0_24] : memref<1x16xf32, #tpu.memory_space<vmem>>, vector<1x16xf32>
      %33 = vector.shape_cast %29 : vector<16x1xf32> to vector<1x16x1xf32>
      %cst_25 = arith.constant dense<0.000000e+00> : vector<1xf32>
      %34 = vector.multi_reduction <add>, %33, %cst_25 [1, 2] : vector<1x16x1xf32> to vector<1xf32>
      %35 = vector.shape_cast %34 : vector<1xf32> to vector<1x1x1xf32>
      %36 = vector.extract %35[0, 0, 0] : f32 from vector<1x1x1xf32>
      %37 = vector.shape_cast %30 : vector<16x1xf32> to vector<1x16x1xf32>
      %cst_26 = arith.constant dense<0.000000e+00> : vector<1xf32>
      %38 = vector.multi_reduction <add>, %37, %cst_26 [1, 2] : vector<1x16x1xf32> to vector<1xf32>
      %39 = vector.shape_cast %38 : vector<1xf32> to vector<1x1x1xf32>
      %40 = vector.extract %39[0, 0, 0] : f32 from vector<1x1x1xf32>
      %cst_27 = arith.constant dense<0.000000e+00> : vector<16x16xf32>
      %41 = tpu.matmul %28, %28, %cst_27 {dimension_numbers = #tpu.dot_dimension_numbers<[1], [1], [0], [0], [0, 0, 1, 0], [], []>} : vector<16x128xf32>, vector<16x128xf32>, vector<16x16xf32> -> vector<16x16xf32>
      %42 = tpu.iota {dimensions = array<i32: 0>} : vector<16x16xi32>
      %43 = tpu.iota {dimensions = array<i32: 1>} : vector<16x16xi32>
      %44 = arith.cmpi eq, %42, %43 : vector<16x16xi32>
      %cst_28 = arith.constant 0.000000e+00 : f32
      %45 = vector.broadcast %cst_28 : f32 to vector<16x16xf32>
      %46 = arith.select %44, %41, %45 : vector<16x16xi1>, vector<16x16xf32>
      %cst_29 = arith.constant dense<0.000000e+00> : vector<16xf32>
      %47 = vector.multi_reduction <add>, %46, %cst_29 [1] : vector<16x16xf32> to vector<16xf32>
      %48 = vector.shape_cast %47 : vector<16xf32> to vector<16x1xf32>
      %cst_30 = arith.constant dense<0.000000e+00> : vector<16xf32>
      %49 = vector.multi_reduction <add>, %46, %cst_30 [0] : vector<16x16xf32> to vector<16xf32>
      %50 = vector.shape_cast %49 : vector<16xf32> to vector<1x16xf32>
      %51 = math.sqrt %48 : vector<16x1xf32>
      %52 = math.sqrt %50 : vector<1x16xf32>
      %53 = vector.broadcast %51 : vector<16x1xf32> to vector<16x16xf32>
      %54 = vector.broadcast %52 : vector<1x16xf32> to vector<16x16xf32>
      %55 = arith.mulf %53, %54 : vector<16x16xf32>
      %cst_31 = arith.constant 1.000000e-15 : f32
      %56 = vector.broadcast %cst_31 : f32 to vector<16x16xf32>
      %57 = arith.maximumf %55, %56 : vector<16x16xf32>
      %58 = arith.divf %41, %57 : vector<16x16xf32>
      %59 = math.exp %58 : vector<16x16xf32>
      %60 = vector.broadcast %29 : vector<16x1xf32> to vector<16x16xf32>
      %61 = arith.mulf %60, %59 : vector<16x16xf32>
      %cst_32 = arith.constant dense<0.000000e+00> : vector<16xf32>
      %62 = vector.multi_reduction <add>, %61, %cst_32 [0] : vector<16x16xf32> to vector<16xf32>
      %63 = vector.shape_cast %62 : vector<16xf32> to vector<1x16xf32>
      %64 = vector.broadcast %30 : vector<16x1xf32> to vector<16x16xf32>
      %65 = arith.mulf %64, %59 : vector<16x16xf32>
      %cst_33 = arith.constant dense<0.000000e+00> : vector<16xf32>
      %66 = vector.multi_reduction <add>, %65, %cst_33 [0] : vector<16x16xf32> to vector<16xf32>
      %67 = vector.shape_cast %66 : vector<16xf32> to vector<1x16xf32>
      %68 = arith.mulf %63, %31 : vector<1x16xf32>
      %69 = vector.shape_cast %68 : vector<1x16xf32> to vector<1x1x16xf32>
      %cst_34 = arith.constant dense<0.000000e+00> : vector<1xf32>
      %70 = vector.multi_reduction <add>, %69, %cst_34 [1, 2] : vector<1x1x16xf32> to vector<1xf32>
      %71 = vector.shape_cast %70 : vector<1xf32> to vector<1x1x1xf32>
      %72 = vector.extract %71[0, 0, 0] : f32 from vector<1x1x1xf32>
      %73 = arith.mulf %67, %32 : vector<1x16xf32>
      %74 = vector.shape_cast %73 : vector<1x16xf32> to vector<1x1x16xf32>
      %cst_35 = arith.constant dense<0.000000e+00> : vector<1xf32>
      %75 = vector.multi_reduction <add>, %74, %cst_35 [1, 2] : vector<1x1x16xf32> to vector<1xf32>
      %76 = vector.shape_cast %75 : vector<1xf32> to vector<1x1x1xf32>
      %77 = vector.extract %76[0, 0, 0] : f32 from vector<1x1x1xf32>
      %cst_36 = arith.constant 1.000000e+00 : f32
      %78 = arith.mulf %cst_36, %77 : f32
      %79 = arith.addf %72, %78 : f32
      %cst_37 = arith.constant 1.000000e+00 : f32
      %80 = arith.maximumf %36, %cst_37 : f32
      %cst_38 = arith.constant 1.000000e+00 : f32
      %81 = arith.maximumf %40, %cst_38 : f32
      %82 = vector.broadcast %80 : f32 to vector<1x16xf32>
      %83 = arith.divf %63, %82 : vector<1x16xf32>
      %cst_39 = arith.constant 0.000000e+00 : f32
      %84 = arith.addf %cst_39, %79 : f32
      %85 = vector.broadcast %84 : f32 to vector<1x16xf32>
      %86 = arith.divf %83, %85 : vector<1x16xf32>
      %87 = math.log %86 : vector<1x16xf32>
      %88 = arith.mulf %87, %32 : vector<1x16xf32>
      %89 = vector.shape_cast %88 : vector<1x16xf32> to vector<1x1x16xf32>
      %cst_40 = arith.constant dense<0.000000e+00> : vector<1xf32>
      %90 = vector.multi_reduction <add>, %89, %cst_40 [1, 2] : vector<1x1x16xf32> to vector<1xf32>
      %91 = vector.shape_cast %90 : vector<1xf32> to vector<1x1x1xf32>
      %92 = vector.extract %91[0, 0, 0] : f32 from vector<1x1x1xf32>
      %cst_41 = arith.constant 0.000000e+00 : f32
      %93 = arith.subf %cst_41, %92 : f32
      %94 = arith.divf %93, %81 : f32
      %95 = arith.mulf %36, %36 : f32
      %cst_42 = arith.constant 1.000000e+00 : f32
      %96 = arith.maximumf %95, %cst_42 : f32
      %97 = arith.divf %72, %96 : f32
      %98 = arith.mulf %40, %40 : f32
      %cst_43 = arith.constant 1.000000e+00 : f32
      %99 = arith.maximumf %98, %cst_43 : f32
      %100 = arith.divf %77, %99 : f32
      %cst_44 = arith.constant 1.000000e+00 : f32
      %101 = arith.mulf %cst_44, %100 : f32
      %102 = arith.addf %97, %101 : f32
      %103 = arith.divf %97, %102 : f32
      %cst_45 = arith.constant 0.000000e+00 : f32
      %104 = arith.cmpf oeq, %36, %cst_45 : f32
      %cst_46 = arith.constant 0.000000e+00 : f32
      %105 = arith.cmpf oeq, %40, %cst_46 : f32
      %106 = arith.ori %104, %105 : i1
      %cst_47 = arith.constant 0.000000e+00 : f32
      %107 = arith.select %106, %cst_47, %94 : f32
      %cst_48 = arith.constant 5.000000e-01 : f32
      %108 = arith.mulf %107, %cst_48 : f32
      %cst_49 = arith.constant 0.000000e+00 : f32
      %109 = arith.select %106, %cst_49, %103 : f32
      %110 = tpu.iota {dimensions = array<i32: 1>} : vector<1x128xi32>
      %c0_i32_50 = arith.constant 0 : i32
      %111 = vector.broadcast %c0_i32_50 : i32 to vector<1x128xi32>
      %112 = arith.cmpi eq, %110, %111 : vector<1x128xi32>
      %c1_i32_51 = arith.constant 1 : i32
      %113 = vector.broadcast %c1_i32_51 : i32 to vector<1x128xi32>
      %114 = arith.cmpi eq, %110, %113 : vector<1x128xi32>
      %cst_52 = arith.constant 0.000000e+00 : f32
      %115 = vector.broadcast %109 : f32 to vector<1x128xf32>
      %116 = vector.broadcast %cst_52 : f32 to vector<1x128xf32>
      %117 = arith.select %114, %115, %116 : vector<1x128xi1>, vector<1x128xf32>
      %118 = vector.broadcast %108 : f32 to vector<1x128xf32>
      %119 = arith.select %112, %118, %117 : vector<1x128xi1>, vector<1x128xf32>
      %c0_53 = arith.constant 0 : index
      %c0_54 = arith.constant 0 : index
      %120 = vector.load %arg12[%c0_53, %c0_54] : memref<1x128xf32, #tpu.memory_space<vmem>>, vector<1x128xf32>
      tpu.vector_store %arg12[%c0_53, %c0_54], %119 {strides = array<i32>} : memref<1x128xf32, #tpu.memory_space<vmem>>, vector<1x128xf32>,
    } else {
    }
    return
  }
  func.func @transform_0(%arg0: i32) -> (i32, i32) {
    %c0_i32 = arith.constant 0 : i32
    %c0_i32_0 = arith.constant 0 : i32
    %c0_i32_1 = arith.constant 0 : i32
    return %c0_i32, %c0_i32_0 : i32, i32
  }
  func.func @transform_1(%arg0: i32) -> (i32, i32) {
    %c0_i32 = arith.constant 0 : i32
    %c0_i32_0 = arith.constant 0 : i32
    %c0_i32_1 = arith.constant 0 : i32
    return %c0_i32, %c0_i32_0 : i32, i32
  }
  func.func @transform_2(%arg0: i32) -> (i32, i32) {
    %c0_i32 = arith.constant 0 : i32
    %c0_i32_0 = arith.constant 0 : i32
    %c0_i32_1 = arith.constant 0 : i32
    return %c0_i32, %c0_i32_0 : i32, i32
  }
  func.func @transform_3(%arg0: i32) -> (i32, i32) {
    %c0_i32 = arith.constant 0 : i32
    %c0_i32_0 = arith.constant 0 : i32
    %c0_i32_1 = arith.constant 0 : i32
    return %c0_i32, %c0_i32_0 : i32, i32
  }
  func.func @transform_4(%arg0: i32) -> (i32, i32) {
    %c0_i32 = arith.constant 0 : i32
    %c0_i32_0 = arith.constant 0 : i32
    %c0_i32_1 = arith.constant 0 : i32
    return %c0_i32, %c0_i32_0 : i32, i32
  }
  func.func @transform_5(%arg0: i32) -> (i32, i32) {
    %c0_i32 = arith.constant 0 : i32
    %c0_i32_0 = arith.constant 0 : i32
    return %arg0, %c0_i32 : i32, i32
  }
  func.func @transform_6(%arg0: i32) -> (i32, i32) {
    %c0_i32 = arith.constant 0 : i32
    %c0_i32_0 = arith.constant 0 : i32
    %c0_i32_1 = arith.constant 0 : i32
    return %c0_i32, %c0_i32_0 : i32, i32
  }
  func.func @transform_7(%arg0: i32) -> (i32, i32) {
    %c0_i32 = arith.constant 0 : i32
    %c0_i32_0 = arith.constant 0 : i32
    %c0_i32_1 = arith.constant 0 : i32
    return %c0_i32, %c0_i32_0 : i32, i32
  }
  func.func @transform_8(%arg0: i32) -> (i32, i32) {
    %c0_i32 = arith.constant 0 : i32
    %c0_i32_0 = arith.constant 0 : i32
    %c0_i32_1 = arith.constant 0 : i32
    return %c0_i32, %c0_i32_0 : i32, i32
  }
  func.func @transform_9(%arg0: i32) -> (i32, i32) {
    %c0_i32 = arith.constant 0 : i32
    %c0_i32_0 = arith.constant 0 : i32
    %c0_i32_1 = arith.constant 0 : i32
    return %c0_i32, %c0_i32_0 : i32, i32
  }
  func.func @transform_10(%arg0: i32) -> (i32, i32) {
    %c0_i32 = arith.constant 0 : i32
    %c0_i32_0 = arith.constant 0 : i32
    return %arg0, %c0_i32 : i32, i32
  }
  func.func @transform_11(%arg0: i32) -> (i32, i32) {
    %c0_i32 = arith.constant 0 : i32
    %c0_i32_0 = arith.constant 0 : i32
    %c0_i32_1 = arith.constant 0 : i32
    return %c0_i32, %c0_i32_0 : i32, i32
  }
}

</mosaic_0001>

<llo_original>
// kernel: autoencoder_forward.1
$region0: #{autoencoder_forward.1}
  #allocation0 [shape = 'u32[]', space=smem, size = 0x4, offset = 0x4, fixed_abs, tag = 'smem constant byte address 0x4 - core index']
  #allocation1 [shape = 'u32[144,128]{1,0:T(1,128)}', space=vmem, size = 0x12000, scoped, tag = 'internal scratch']
  #allocation2 [shape = 'f32[16,128]{1,0:T(8,128)}', space=vmem, size = 0x2000, scoped, tag = 'scratch operand']
  %s0 = inlined_call_operand.vmem [shape: f32[16,1], index: 0, kind: input, shape index: {}]
  %s1 = inlined_call_operand.vmem [shape: f32[16,1], index: 1, kind: input, shape index: {}]
  %s2 = inlined_call_operand.vmem [shape: f32[1,16], index: 2, kind: input, shape index: {}]
  %s3 = inlined_call_operand.vmem [shape: f32[1,16], index: 3, kind: input, shape index: {}]
  %s4 = inlined_call_operand.vmem [shape: f32[16,1], index: 4, kind: input, shape index: {}]
  %s5 = inlined_call_operand.vmem [shape: f32[16,128], index: 5, kind: input, shape index: {}]
  %s6 = inlined_call_operand.vmem [shape: f32[128,128], index: 6, kind: input, shape index: {}]
  %s7 = inlined_call_operand.vmem [shape: f32[1,128], index: 7, kind: input, shape index: {}]
  %s8 = inlined_call_operand.vmem [shape: f32[128,256], index: 8, kind: input, shape index: {}]
  %s9 = inlined_call_operand.vmem [shape: f32[1,256], index: 9, kind: input, shape index: {}]
  %s10 = inlined_call_operand.hbm [shape: f32[16,128], index: 10, kind: output, shape index: {0}]
  %s11 = inlined_call_operand.vmem [shape: f32[1,128], index: 11, kind: output, shape index: {1}]
  %12 = xla_tuple %s10, %s11
  %s13 = sld [smem:[#allocation0]]
  $region85: #{autoencoder_forward.1} parent=0
    _
  %s15 = ssub.s32 1, %s13
  %s16 = scalar_select 0, %s15, %s13
  $region1: #{autoencoder_forward.1} parent=0
    #allocation3 [shape = 'u8[8192]{0}', space=vmem, size = 0x2000, scoped, tag = 'output window, operand 0']
    #allocation4 [shape = 's32[2]{0}', space=sflag, size = 0x8, scoped, tag = 'scoped memory for autoencoder_forward.1']
    %17 = vsyncpa [#allocation4], 0
    %s18 = scalar_lea.sflag [#allocation4], 1
    %19 = vsyncpa %s18, 0
    loop: start=0, step=1, limit=4
    $region2: #{autoencoder_forward.1} parent=1 // loop_pre_header
      _
    $region3: #{autoencoder_forward.1} parent=1 // loop_header
      %s21 = sphi 0, %s25
      %p22 = scmp.ge.s32.totalorder %s21, 4
      %s29 = sphi 0, %s29
      %s31 = sphi 0, %s29
      %s32 = sphi 0, %s31
      %s46 = sphi 0, %s32
      %s50 = sphi 0, %s50
      %s52 = sphi 0, %s50
      %s53 = sphi 0, %s52
      %s67 = sphi 0, %s53
      %s71 = sphi 0, %s71
      %s73 = sphi 0, %s71
      %s74 = sphi 0, %s73
      %s88 = sphi 0, %s74
      %s92 = sphi 0, %s92
      %s94 = sphi 0, %s92
      %s95 = sphi 0, %s94
      %s109 = sphi 0, %s95
      %s113 = sphi 0, %s113
      %s115 = sphi 0, %s113
      %s116 = sphi 0, %s115
      %s130 = sphi 0, %s116
      %s136 = sphi 0, %s138
      %s139 = sphi 0, %s136
      %s140 = sphi 0, %s139
      %s156 = sphi 0, %s140
      %s160 = sphi 0, %s160
      %s162 = sphi 0, %s160
      %s163 = sphi 0, %s162
      %s177 = sphi 0, %s163
      %s181 = sphi 0, %s181
      %s183 = sphi 0, %s181
      %s184 = sphi 0, %s183
      %s198 = sphi 0, %s184
      %s202 = sphi 0, %s202
      %s204 = sphi 0, %s202
      %s205 = sphi 0, %s204
      %s219 = sphi 0, %s205
      %s223 = sphi 0, %s223
      %s225 = sphi 0, %s223
      %s226 = sphi 0, %s225
      %s240 = sphi 0, %s226
      %s246 = sphi 0, %s248
      %s249 = sphi 0, %s246
      %s250 = sphi 0, %s249
      %s266 = sphi 0, %s250
      %s270 = sphi 0, %s270
      %s272 = sphi 0, %s270
      %s273 = sphi 0, %s272
      %s287 = sphi 0, %s273
    $region4: #{autoencoder_forward.1} parent=1 // loop_header_branch
      %24 = sbr.rel (%p22) target = $region8
    $region5: #{autoencoder_forward.1} parent=1 // loop_body
      %s26 = ssub.s32 %s21, 1
      %s27 = ssub.s32 %s21, 2
      %s28 = sadd.s32 %s21, 1
      %s30 = sadd.s32 %s29, 1
      %p33 = scmp.eq.s32.totalorder %s21, 1
      %p34 = scmp.ne.s32.totalorder %s29, %s31
      %p35 = scmp.eq.s32.totalorder %s21, 0
      %p36 = por %p34, %p35
      %p37 = scmp.ne.s32.totalorder %s29, %s31
      %p38 = scmp.eq.s32.totalorder %s26, 1
      %p39 = por %p37, %p38
      %p40 = scmp.ne.s32.totalorder %s31, %s32
      %p41 = scmp.eq.s32.totalorder %s26, 0
      %p42 = por %p40, %p41
      %p43 = scmp.ne.s32.totalorder %s31, %s32
      %p44 = scmp.eq.s32.totalorder %s27, 1
      %p45 = por %p43, %p44
      %p47 = scmp.ne.s32.totalorder %s32, %s46
      %p48 = scmp.eq.s32.totalorder %s27, 0
      %p49 = por %p47, %p48
      %s51 = sadd.s32 %s50, 1
      %p54 = scmp.eq.s32.totalorder %s21, 1
      %p55 = scmp.ne.s32.totalorder %s50, %s52
      %p56 = scmp.eq.s32.totalorder %s21, 0
      %p57 = por %p55, %p56
      %p58 = scmp.ne.s32.totalorder %s50, %s52
      %p59 = scmp.eq.s32.totalorder %s26, 1
      %p60 = por %p58, %p59
      %p61 = scmp.ne.s32.totalorder %s52, %s53
      %p62 = scmp.eq.s32.totalorder %s26, 0
      %p63 = por %p61, %p62
      %p64 = scmp.ne.s32.totalorder %s52, %s53
      %p65 = scmp.eq.s32.totalorder %s27, 1
      %p66 = por %p64, %p65
      %p68 = scmp.ne.s32.totalorder %s53, %s67
      %p69 = scmp.eq.s32.totalorder %s27, 0
      %p70 = por %p68, %p69
      %s72 = sadd.s32 %s71, 1
      %p75 = scmp.eq.s32.totalorder %s21, 1
      %p76 = scmp.ne.s32.totalorder %s71, %s73
      %p77 = scmp.eq.s32.totalorder %s21, 0
      %p78 = por %p76, %p77
      %p79 = scmp.ne.s32.totalorder %s71, %s73
      %p80 = scmp.eq.s32.totalorder %s26, 1
      %p81 = por %p79, %p80
      %p82 = scmp.ne.s32.totalorder %s73, %s74
      %p83 = scmp.eq.s32.totalorder %s26, 0
      %p84 = por %p82, %p83
      %p85 = scmp.ne.s32.totalorder %s73, %s74
      %p86 = scmp.eq.s32.totalorder %s27, 1
      %p87 = por %p85, %p86
      %p89 = scmp.ne.s32.totalorder %s74, %s88
      %p90 = scmp.eq.s32.totalorder %s27, 0
      %p91 = por %p89, %p90
      %s93 = sadd.s32 %s92, 1
      %p96 = scmp.eq.s32.totalorder %s21, 1
      %p97 = scmp.ne.s32.totalorder %s92, %s94
      %p98 = scmp.eq.s32.totalorder %s21, 0
      %p99 = por %p97, %p98
      %p100 = scmp.ne.s32.totalorder %s92, %s94
      %p101 = scmp.eq.s32.totalorder %s26, 1
      %p102 = por %p100, %p101
      %p103 = scmp.ne.s32.totalorder %s94, %s95
      %p104 = scmp.eq.s32.totalorder %s26, 0
      %p105 = por %p103, %p104
      %p106 = scmp.ne.s32.totalorder %s94, %s95
      %p107 = scmp.eq.s32.totalorder %s27, 1
      %p108 = por %p106, %p107
      %p110 = scmp.ne.s32.totalorder %s95, %s109
      %p111 = scmp.eq.s32.totalorder %s27, 0
      %p112 = por %p110, %p111
      %s114 = sadd.s32 %s113, 1
      %p117 = scmp.eq.s32.totalorder %s21, 1
      %p118 = scmp.ne.s32.totalorder %s113, %s115
      %p119 = scmp.eq.s32.totalorder %s21, 0
      %p120 = por %p118, %p119
      %p121 = scmp.ne.s32.totalorder %s113, %s115
      %p122 = scmp.eq.s32.totalorder %s26, 1
      %p123 = por %p121, %p122
      %p124 = scmp.ne.s32.totalorder %s115, %s116
      %p125 = scmp.eq.s32.totalorder %s26, 0
      %p126 = por %p124, %p125
      %p127 = scmp.ne.s32.totalorder %s115, %s116
      %p128 = scmp.eq.s32.totalorder %s27, 1
      %p129 = por %p127, %p128
      %p131 = scmp.ne.s32.totalorder %s116, %s130
      %p132 = scmp.eq.s32.totalorder %s27, 0
      %p133 = por %p131, %p132
      %s134 = ssub.s32 %s21, %s28
      %p135 = scmp.eq.s32.totalorder %s134, 0
      %s137 = sadd.s32 %s136, 1
      %s138 = scalar_select %p135, %s136, %s137
      %p141 = pneg %p135
      %p142 = scmp.eq.s32.totalorder %s21, 1
      %p143 = por %p141, %p142
      %p144 = scmp.ne.s32.totalorder %s136, %s139
      %p145 = scmp.eq.s32.totalorder %s21, 0
      %p146 = por %p144, %p145
      %p147 = scmp.ne.s32.totalorder %s136, %s139
      %p148 = scmp.eq.s32.totalorder %s26, 1
      %p149 = por %p147, %p148
      %p150 = scmp.ne.s32.totalorder %s139, %s140
      %p151 = scmp.eq.s32.totalorder %s26, 0
      %p152 = por %p150, %p151
      %p153 = scmp.ne.s32.totalorder %s139, %s140
      %p154 = scmp.eq.s32.totalorder %s27, 1
      %p155 = por %p153, %p154
      %p157 = scmp.ne.s32.totalorder %s140, %s156
      %p158 = scmp.eq.s32.totalorder %s27, 0
      %p159 = por %p157, %p158
      %s161 = sadd.s32 %s160, 1
      %p164 = scmp.eq.s32.totalorder %s21, 1
      %p165 = scmp.ne.s32.totalorder %s160, %s162
      %p166 = scmp.eq.s32.totalorder %s21, 0
      %p167 = por %p165, %p166
      %p168 = scmp.ne.s32.totalorder %s160, %s162
      %p169 = scmp.eq.s32.totalorder %s26, 1
      %p170 = por %p168, %p169
      %p171 = scmp.ne.s32.totalorder %s162, %s163
      %p172 = scmp.eq.s32.totalorder %s26, 0
      %p173 = por %p171, %p172
      %p174 = scmp.ne.s32.totalorder %s162, %s163
      %p175 = scmp.eq.s32.totalorder %s27, 1
      %p176 = por %p174, %p175
      %p178 = scmp.ne.s32.totalorder %s163, %s177
      %p179 = scmp.eq.s32.totalorder %s27, 0
      %p180 = por %p178, %p179
      %s182 = sadd.s32 %s181, 1
      %p185 = scmp.eq.s32.totalorder %s21, 1
      %p186 = scmp.ne.s32.totalorder %s181, %s183
      %p187 = scmp.eq.s32.totalorder %s21, 0
      %p188 = por %p186, %p187
      %p189 = scmp.ne.s32.totalorder %s181, %s183
      %p190 = scmp.eq.s32.totalorder %s26, 1
      %p191 = por %p189, %p190
      %p192 = scmp.ne.s32.totalorder %s183, %s184
      %p193 = scmp.eq.s32.totalorder %s26, 0
      %p194 = por %p192, %p193
      %p195 = scmp.ne.s32.totalorder %s183, %s184
      %p196 = scmp.eq.s32.totalorder %s27, 1
      %p197 = por %p195, %p196
      %p199 = scmp.ne.s32.totalorder %s184, %s198
      %p200 = scmp.eq.s32.totalorder %s27, 0
      %p201 = por %p199, %p200
      %s203 = sadd.s32 %s202, 1
      %p206 = scmp.eq.s32.totalorder %s21, 1
      %p207 = scmp.ne.s32.totalorder %s202, %s204
      %p208 = scmp.eq.s32.totalorder %s21, 0
      %p209 = por %p207, %p208
      %p210 = scmp.ne.s32.totalorder %s202, %s204
      %p211 = scmp.eq.s32.totalorder %s26, 1
      %p212 = por %p210, %p211
      %p213 = scmp.ne.s32.totalorder %s204, %s205
      %p214 = scmp.eq.s32.totalorder %s26, 0
      %p215 = por %p213, %p214
      %p216 = scmp.ne.s32.totalorder %s204, %s205
      %p217 = scmp.eq.s32.totalorder %s27, 1
      %p218 = por %p216, %p217
      %p220 = scmp.ne.s32.totalorder %s205, %s219
      %p221 = scmp.eq.s32.totalorder %s27, 0
      %p222 = por %p220, %p221
      %s224 = sadd.s32 %s223, 1
      %p227 = scmp.eq.s32.totalorder %s21, 1
      %p228 = scmp.ne.s32.totalorder %s223, %s225
      %p229 = scmp.eq.s32.totalorder %s21, 0
      %p230 = por %p228, %p229
      %p231 = scmp.ne.s32.totalorder %s223, %s225
      %p232 = scmp.eq.s32.totalorder %s26, 1
      %p233 = por %p231, %p232
      %p234 = scmp.ne.s32.totalorder %s225, %s226
      %p235 = scmp.eq.s32.totalorder %s26, 0
      %p236 = por %p234, %p235
      %p237 = scmp.ne.s32.totalorder %s225, %s226
      %p238 = scmp.eq.s32.totalorder %s27, 1
      %p239 = por %p237, %p238
      %p241 = scmp.ne.s32.totalorder %s226, %s240
      %p242 = scmp.eq.s32.totalorder %s27, 0
      %p243 = por %p241, %p242
      %s244 = ssub.s32 %s21, %s28
      %p245 = scmp.eq.s32.totalorder %s244, 0
      %s247 = sadd.s32 %s246, 1
      %s248 = scalar_select %p245, %s246, %s247
      %p251 = pneg %p245
      %p252 = scmp.eq.s32.totalorder %s21, 1
      %p253 = por %p251, %p252
      %p254 = scmp.ne.s32.totalorder %s246, %s249
      %p255 = scmp.eq.s32.totalorder %s21, 0
      %p256 = por %p254, %p255
      %p257 = scmp.ne.s32.totalorder %s246, %s249
      %p258 = scmp.eq.s32.totalorder %s26, 1
      %p259 = por %p257, %p258
      %p260 = scmp.ne.s32.totalorder %s249, %s250
      %p261 = scmp.eq.s32.totalorder %s26, 0
      %p262 = por %p260, %p261
      %p263 = scmp.ne.s32.totalorder %s249, %s250
      %p264 = scmp.eq.s32.totalorder %s27, 1
      %p265 = por %p263, %p264
      %p267 = scmp.ne.s32.totalorder %s250, %s266
      %p268 = scmp.eq.s32.totalorder %s27, 0
      %p269 = por %p267, %p268
      %s271 = sadd.s32 %s270, 1
      %p274 = scmp.eq.s32.totalorder %s21, 1
      %p275 = scmp.ne.s32.totalorder %s270, %s272
      %p276 = scmp.eq.s32.totalorder %s21, 0
      %p277 = por %p275, %p276
      %p278 = scmp.ne.s32.totalorder %s270, %s272
      %p279 = scmp.eq.s32.totalorder %s26, 1
      %p280 = por %p278, %p279
      %p281 = scmp.ne.s32.totalorder %s272, %s273
      %p282 = scmp.eq.s32.totalorder %s26, 0
      %p283 = por %p281, %p282
      %p284 = scmp.ne.s32.totalorder %s272, %s273
      %p285 = scmp.eq.s32.totalorder %s27, 1
      %p286 = por %p284, %p285
      %p288 = scmp.ne.s32.totalorder %s273, %s287
      %p289 = scmp.eq.s32.totalorder %s27, 0
      %p290 = por %p288, %p289
      %p291 = scmp.le.s32.totalorder 1, %s21
      %p292 = scmp.lt.s32.totalorder %s21, 3
      %p293 = pnand %p291, %p292
      %p294 = pneg %p293
      // Predicated region
      $region9: #{autoencoder_forward.1} parent=5 // pred_check
        _
      $region10: #{autoencoder_forward.1} parent=5 // pred_check_branch
        %296 = sbr.rel (%p293) target = $region12
      $region11: #{autoencoder_forward.1} parent=5 // pred_region
        %s297 = ssub.s32 %s21, 1
        // Predicated region
        $region13: #{autoencoder_forward.1} parent=11 // pred_check
          %p298 = pneg %p42
        $region14: #{autoencoder_forward.1} parent=11 // pred_check_branch
          %300 = sbr.rel (%p298) target = $region16
        $region15: #{autoencoder_forward.1} parent=11 // pred_region
          _
        $region16: #{autoencoder_forward.1} parent=11 // pred_fallthru
          _
        // Predicated region
        $region17: #{autoencoder_forward.1} parent=11 // pred_check
          %p301 = pneg %p63
        $region18: #{autoencoder_forward.1} parent=11 // pred_check_branch
          %303 = sbr.rel (%p301) target = $region20
        $region19: #{autoencoder_forward.1} parent=11 // pred_region
          _
        $region20: #{autoencoder_forward.1} parent=11 // pred_fallthru
          _
        // Predicated region
        $region21: #{autoencoder_forward.1} parent=11 // pred_check
          %p304 = pneg %p84
        $region22: #{autoencoder_forward.1} parent=11 // pred_check_branch
          %306 = sbr.rel (%p304) target = $region24
        $region23: #{autoencoder_forward.1} parent=11 // pred_region
          _
        $region24: #{autoencoder_forward.1} parent=11 // pred_fallthru
          _
        // Predicated region
        $region25: #{autoencoder_forward.1} parent=11 // pred_check
          %p307 = pneg %p105
        $region26: #{autoencoder_forward.1} parent=11 // pred_check_branch
          %309 = sbr.rel (%p307) target = $region28
        $region27: #{autoencoder_forward.1} parent=11 // pred_region
          _
        $region28: #{autoencoder_forward.1} parent=11 // pred_fallthru
          _
        // Predicated region
        $region29: #{autoencoder_forward.1} parent=11 // pred_check
          %p310 = pneg %p126
        $region30: #{autoencoder_forward.1} parent=11 // pred_check_branch
          %312 = sbr.rel (%p310) target = $region32
        $region31: #{autoencoder_forward.1} parent=11 // pred_region
          _
        $region32: #{autoencoder_forward.1} parent=11 // pred_fallthru
          _
        // Predicated region
        $region33: #{autoencoder_forward.1} parent=11 // pred_check
          %p313 = pneg %p173
        $region34: #{autoencoder_forward.1} parent=11 // pred_check_branch
          %315 = sbr.rel (%p313) target = $region36
        $region35: #{autoencoder_forward.1} parent=11 // pred_region
          _
        $region36: #{autoencoder_forward.1} parent=11 // pred_fallthru
          _
        // Predicated region
        $region37: #{autoencoder_forward.1} parent=11 // pred_check
          %p316 = pneg %p194
        $region38: #{autoencoder_forward.1} parent=11 // pred_check_branch
          %318 = sbr.rel (%p316) target = $region40
        $region39: #{autoencoder_forward.1} parent=11 // pred_region
          _
        $region40: #{autoencoder_forward.1} parent=11 // pred_fallthru
          _
        // Predicated region
        $region41: #{autoencoder_forward.1} parent=11 // pred_check
          %p319 = pneg %p215
        $region42: #{autoencoder_forward.1} parent=11 // pred_check_branch
          %321 = sbr.rel (%p319) target = $region44
        $region43: #{autoencoder_forward.1} parent=11 // pred_region
          _
        $region44: #{autoencoder_forward.1} parent=11 // pred_fallthru
          _
        // Predicated region
        $region45: #{autoencoder_forward.1} parent=11 // pred_check
          %p322 = pneg %p236
        $region46: #{autoencoder_forward.1} parent=11 // pred_check_branch
          %324 = sbr.rel (%p322) target = $region48
        $region47: #{autoencoder_forward.1} parent=11 // pred_region
          _
        $region48: #{autoencoder_forward.1} parent=11 // pred_fallthru
          _
      $region12: #{autoencoder_forward.1} parent=5 // pred_fallthru
        _
      %p325 = scmp.lt.s32.totalorder %s21, 2
      // Predicated region
      $region49: #{autoencoder_forward.1} parent=5 // pred_check
        %p326 = pneg %p325
      $region50: #{autoencoder_forward.1} parent=5 // pred_check_branch
        %328 = sbr.rel (%p326) target = $region52
      $region51: #{autoencoder_forward.1} parent=5 // pred_region
        // Predicated region
        $region53: #{autoencoder_forward.1} parent=51 // pred_check
          %p329 = pneg %p146
        $region54: #{autoencoder_forward.1} parent=51 // pred_check_branch
          %331 = sbr.rel (%p329) target = $region56
        $region55: #{autoencoder_forward.1} parent=51 // pred_region
          %p332 = scmp.lt.s32.totalorder %s21, 1
          %s333 = scalar_select %p332, %s21, 1
          %s334 = smul.addr %s333, 8
          %s335 = scalar_lea.vmem %s5, %s334
        $region56: #{autoencoder_forward.1} parent=51 // pred_fallthru
          _
      $region52: #{autoencoder_forward.1} parent=5 // pred_fallthru
        _
      %p336 = scmp.le.s32.totalorder 1, %s21
      %p337 = scmp.lt.s32.totalorder %s21, 3
      %p338 = pnand %p336, %p337
      %p339 = pneg %p338
      // Predicated region
      $region57: #{autoencoder_forward.1} parent=5 // pred_check
        _
      $region58: #{autoencoder_forward.1} parent=5 // pred_check_branch
        %341 = sbr.rel (%p338) target = $region60
      $region59: #{autoencoder_forward.1} parent=5 // pred_region
        %s342 = ssub.s32 %s21, 1
        %p343 = pneg %p42
        %p344 = pneg %p39
        %p345 = pneg %p63
        %p346 = pneg %p60
        %p347 = pneg %p84
        %p348 = pneg %p81
        %p349 = pneg %p105
        %p350 = pneg %p102
        %p351 = pneg %p126
        %p352 = pneg %p123
        %p353 = scmp.lt.s32.totalorder %s26, 1
        %s354 = scalar_select %p353, %s26, 1
        %s355 = smul.addr %s354, 8
        %s356 = scalar_lea.vmem %s5, %s355
        %p357 = pneg %p152
        %p358 = pneg %p149
        %p359 = pneg %p173
        %p360 = pneg %p170
        %p361 = pneg %p194
        %p362 = pneg %p191
        %p363 = pneg %p215
        %p364 = pneg %p212
        %p365 = pneg %p236
        %p366 = pneg %p233
        %p367 = pneg %p262
        %p368 = pneg %p259
        %s369 = sand.u32 %s249, 1
        %s370 = scalar_lea.sflag [#allocation4], %s369
        %s371 = sand.u32 %s249, 1
        %s372 = smul.addr %s371, 8
        %s373 = scalar_lea.vmem [#allocation3], %s372
        %p374 = pneg %p283
        %p375 = pneg %p280
        %p376 = scmp.lt.s32.totalorder %s26, 1
        %s377 = scalar_select %p376, %s26, 1
        %s378 = smul.addr %s377, 8
        %s379 = scalar_lea.vmem %s5, %s378
        %v380 = vld [vmem:[%s379] sm:$0xff]
        %v381 = vld [vmem:[%s6] sm:$0xff]
        %v382 = vld [vmem:[%s6 + $0x8] sm:$0xff]
        %v383 = vld [vmem:[%s6 + $0x10] sm:$0xff]
        %v384 = vld [vmem:[%s6 + $0x18] sm:$0xff]
        %v385 = vld [vmem:[%s6 + $0x20] sm:$0xff]
        %v386 = vld [vmem:[%s6 + $0x28] sm:$0xff]
        %v387 = vld [vmem:[%s6 + $0x30] sm:$0xff]
        %v388 = vld [vmem:[%s6 + $0x38] sm:$0xff]
        %v389 = vld [vmem:[%s6 + $0x40] sm:$0xff]
        %v390 = vld [vmem:[%s6 + $0x48] sm:$0xff]
        %v391 = vld [vmem:[%s6 + $0x50] sm:$0xff]
        %v392 = vld [vmem:[%s6 + $0x58] sm:$0xff]
        %v393 = vld [vmem:[%s6 + $0x60] sm:$0xff]
        %v394 = vld [vmem:[%s6 + $0x68] sm:$0xff]
        %v395 = vld [vmem:[%s6 + $0x70] sm:$0xff]
        %v396 = vld [vmem:[%s6 + $0x78] sm:$0xff]
        %v397 = vld [vmem:[%s7] sm:$0x1]
        %v399 = vlaneseq
        %v400 = vshrl.u32 %v399, 7
        %v401 = vsub.s32 0, %v400
        %v402 = vrot.slane %v397, %v401
        %404 = vmatprep.subr.mxu0 0.0
        %405 = vmatpush1.msra.mxu0 %v381
        %406 = vmatprep.subr.mxu0 0.0
        %407 = vmatpush1.msra.mxu0 %v382
        %408 = vmatprep.subr.mxu0 0.0
        %409 = vmatpush1.msra.mxu0 %v383
        %410 = vmatprep.subr.mxu0 0.0
        %411 = vmatpush1.msra.mxu0 %v384
        %412 = vmatprep.subr.mxu0 0.0
        %413 = vmatpush1.msra.mxu0 %v385
        %414 = vmatprep.subr.mxu0 0.0
        %415 = vmatpush1.msra.mxu0 %v386
        %416 = vmatprep.subr.mxu0 0.0
        %417 = vmatpush1.msra.mxu0 %v387
        %418 = vmatprep.subr.mxu0 0.0
        %419 = vmatpush1.msra.mxu0 %v388
        %420 = vmatprep.subr.mxu0 0.0
        %421 = vmatpush1.msra.mxu0 %v389
        %422 = vmatprep.subr.mxu0 0.0
        %423 = vmatpush1.msra.mxu0 %v390
        %424 = vmatprep.subr.mxu0 0.0
        %425 = vmatpush1.msra.mxu0 %v391
        %426 = vmatprep.subr.mxu0 0.0
        %427 = vmatpush1.msra.mxu0 %v392
        %428 = vmatprep.subr.mxu0 0.0
        %429 = vmatpush1.msra.mxu0 %v393
        %430 = vmatprep.subr.mxu0 0.0
        %431 = vmatpush1.msra.mxu0 %v394
        %432 = vmatprep.subr.mxu0 0.0
        %433 = vmatpush1.msra.mxu0 %v395
        %434 = vmatprep.subr.mxu0 0.0
        %435 = vmatpush1.msra.mxu0 %v396
        %436 = vmatprep.subr.mxu0 0.0
        %437 = vmatpush1.msra.mxu0 0.0
        %438 = vmatprep.subr.mxu0 0.0
        %439 = vmatpush1.msra.mxu0 0.0
        %440 = vmatprep.subr.mxu0 0.0
        %441 = vmatpush1.msra.mxu0 0.0
        %442 = vmatprep.subr.mxu0 0.0
        %443 = vmatpush1.msra.mxu0 0.0
        %444 = vmatprep.subr.mxu0 0.0
        %445 = vmatpush1.msra.mxu0 0.0
        %446 = vmatprep.subr.mxu0 0.0
        %447 = vmatpush1.msra.mxu0 0.0
        %448 = vmatprep.subr.mxu0 0.0
        %449 = vmatpush1.msra.mxu0 0.0
        %450 = vmatprep.subr.mxu0 0.0
        %451 = vmatpush1.msra.mxu0 0.0
        %452 = vmatprep.subr.mxu0 0.0
        %453 = vmatpush1.msra.mxu0 0.0
        %454 = vmatprep.subr.mxu0 0.0
        %455 = vmatpush1.msra.mxu0 0.0
        %456 = vmatprep.subr.mxu0 0.0
        %457 = vmatpush1.msra.mxu0 0.0
        %458 = vmatprep.subr.mxu0 0.0
        %459 = vmatpush1.msra.mxu0 0.0
        %460 = vmatprep.subr.mxu0 0.0
        %461 = vmatpush1.msra.mxu0 0.0
        %462 = vmatprep.subr.mxu0 0.0
        %463 = vmatpush1.msra.mxu0 0.0
        %464 = vmatprep.subr.mxu0 0.0
        %465 = vmatpush1.msra.mxu0 0.0
        %466 = vmatprep.subr.mxu0 0.0
        %467 = vmatpush1.msra.mxu0 0.0
        %468 = vmatprep.mubr.f32.mxu0 0.0
        %469 = vmatmul.mubr.f32.gmra.mrb[0].mxu0 %v380
        %v470 = vpop.f32.mrb[0].mxu0
        %v471 = vadd.f32 %v402, %v470
        %v472 = vpop.f32.mrb[0].mxu0
        %473 = vdwg.mxu0
        %v474 = vmax.f32 %v471, 0.0
        %v475 = vld [vmem:[%s8] sm:$0xff]
        %v476 = vld [vmem:[%s8 + $0x8] sm:$0xff]
        %v477 = vld [vmem:[%s8 + $0x10] sm:$0xff]
        %v478 = vld [vmem:[%s8 + $0x18] sm:$0xff]
        %v479 = vld [vmem:[%s8 + $0x20] sm:$0xff]
        %v480 = vld [vmem:[%s8 + $0x28] sm:$0xff]
        %v481 = vld [vmem:[%s8 + $0x30] sm:$0xff]
        %v482 = vld [vmem:[%s8 + $0x38] sm:$0xff]
        %v483 = vld [vmem:[%s8 + $0x40] sm:$0xff]
        %v484 = vld [vmem:[%s8 + $0x48] sm:$0xff]
        %v485 = vld [vmem:[%s8 + $0x50] sm:$0xff]
        %v486 = vld [vmem:[%s8 + $0x58] sm:$0xff]
        %v487 = vld [vmem:[%s8 + $0x60] sm:$0xff]
        %v488 = vld [vmem:[%s8 + $0x68] sm:$0xff]
        %v489 = vld [vmem:[%s8 + $0x70] sm:$0xff]
        %v490 = vld [vmem:[%s8 + $0x78] sm:$0xff]
        %v491 = vld [vmem:[%s8 + $0x80] sm:$0xff]
        %v492 = vld [vmem:[%s8 + $0x88] sm:$0xff]
        %v493 = vld [vmem:[%s8 + $0x90] sm:$0xff]
        %v494 = vld [vmem:[%s8 + $0x98] sm:$0xff]
        %v495 = vld [vmem:[%s8 + $0xa0] sm:$0xff]
        %v496 = vld [vmem:[%s8 + $0xa8] sm:$0xff]
        %v497 = vld [vmem:[%s8 + $0xb0] sm:$0xff]
        %v498 = vld [vmem:[%s8 + $0xb8] sm:$0xff]
        %v499 = vld [vmem:[%s8 + $0xc0] sm:$0xff]
        %v500 = vld [vmem:[%s8 + $0xc8] sm:$0xff]
        %v501 = vld [vmem:[%s8 + $0xd0] sm:$0xff]
        %v502 = vld [vmem:[%s8 + $0xd8] sm:$0xff]
        %v503 = vld [vmem:[%s8 + $0xe0] sm:$0xff]
        %v504 = vld [vmem:[%s8 + $0xe8] sm:$0xff]
        %v505 = vld [vmem:[%s8 + $0xf0] sm:$0xff]
        %v506 = vld [vmem:[%s8 + $0xf8] sm:$0xff]
        %v507 = vld [vmem:[%s9] sm:$0x3]
        %v509 = vlaneseq
        %v510 = vshrl.u32 %v509, 7
        %v511 = vsub.s32 0, %v510
        %v512 = vrot.slane %v507, %v511
        %v513 = vlaneseq
        %v514 = vshrl.u32 %v513, 7
        %v515 = vsub.s32 1, %v514
        %v516 = vrot.slane %v507, %v515
        %519 = vmatprep.subr.mxu0 %v476
        %520 = vmatpush1.msra.mxu0 %v475
        %521 = vmatprep.subr.mxu0 %v478
        %522 = vmatpush1.msra.mxu0 %v477
        %523 = vmatprep.subr.mxu0 %v480
        %524 = vmatpush1.msra.mxu0 %v479
        %525 = vmatprep.subr.mxu0 %v482
        %526 = vmatpush1.msra.mxu0 %v481
        %527 = vmatprep.subr.mxu0 %v484
        %528 = vmatpush1.msra.mxu0 %v483
        %529 = vmatprep.subr.mxu0 %v486
        %530 = vmatpush1.msra.mxu0 %v485
        %531 = vmatprep.subr.mxu0 %v488
        %532 = vmatpush1.msra.mxu0 %v487
        %533 = vmatprep.subr.mxu0 %v490
        %534 = vmatpush1.msra.mxu0 %v489
        %535 = vmatprep.subr.mxu0 %v492
        %536 = vmatpush1.msra.mxu0 %v491
        %537 = vmatprep.subr.mxu0 %v494
        %538 = vmatpush1.msra.mxu0 %v493
        %539 = vmatprep.subr.mxu0 %v496
        %540 = vmatpush1.msra.mxu0 %v495
        %541 = vmatprep.subr.mxu0 %v498
        %542 = vmatpush1.msra.mxu0 %v497
        %543 = vmatprep.subr.mxu0 %v500
        %544 = vmatpush1.msra.mxu0 %v499
        %545 = vmatprep.subr.mxu0 %v502
        %546 = vmatpush1.msra.mxu0 %v501
        %547 = vmatprep.subr.mxu0 %v504
        %548 = vmatpush1.msra.mxu0 %v503
        %549 = vmatprep.subr.mxu0 %v506
        %550 = vmatpush1.msra.mxu0 %v505
        %551 = vmatprep.subr.mxu0 0.0
        %552 = vmatpush1.msra.mxu0 0.0
        %553 = vmatprep.subr.mxu0 0.0
        %554 = vmatpush1.msra.mxu0 0.0
        %555 = vmatprep.subr.mxu0 0.0
        %556 = vmatpush1.msra.mxu0 0.0
        %557 = vmatprep.subr.mxu0 0.0
        %558 = vmatpush1.msra.mxu0 0.0
        %559 = vmatprep.subr.mxu0 0.0
        %560 = vmatpush1.msra.mxu0 0.0
        %561 = vmatprep.subr.mxu0 0.0
        %562 = vmatpush1.msra.mxu0 0.0
        %563 = vmatprep.subr.mxu0 0.0
        %564 = vmatpush1.msra.mxu0 0.0
        %565 = vmatprep.subr.mxu0 0.0
        %566 = vmatpush1.msra.mxu0 0.0
        %567 = vmatprep.subr.mxu0 0.0
        %568 = vmatpush1.msra.mxu0 0.0
        %569 = vmatprep.subr.mxu0 0.0
        %570 = vmatpush1.msra.mxu0 0.0
        %571 = vmatprep.subr.mxu0 0.0
        %572 = vmatpush1.msra.mxu0 0.0
        %573 = vmatprep.subr.mxu0 0.0
        %574 = vmatpush1.msra.mxu0 0.0
        %575 = vmatprep.subr.mxu0 0.0
        %576 = vmatpush1.msra.mxu0 0.0
        %577 = vmatprep.subr.mxu0 0.0
        %578 = vmatpush1.msra.mxu0 0.0
        %579 = vmatprep.subr.mxu0 0.0
        %580 = vmatpush1.msra.mxu0 0.0
        %581 = vmatprep.subr.mxu0 0.0
        %582 = vmatpush1.msra.mxu0 0.0
        %583 = vmatprep.mubr.f32.mxu0 0.0
        %584 = vmatmul.mubr.f32.gmra.mrb[0].mxu0 %v474
        %v585 = vpop.f32.mrb[0].mxu0
        %v586 = vadd.f32 %v512, %v585
        %v587 = vpop.f32.mrb[0].mxu0
        %v588 = vadd.f32 %v516, %v587
        %589 = vdwg.mxu0
        %v590 = vxor.u32 %v586, 2147483648
        %v591 = vmul.f32 %v590, 1.442695
        %v592 = vpow.pop %v591
        %v593 = vadd.f32 %v592, 1.0
        %v594 = vrcp.pop %v593
        %v595 = vmul.f32 1.0, %v594
        %596 = vst [vmem:[%s373] sm:$0xff] %v595
        %s597 = smul.u32 %s26, 8
        %s598 = scalar_lea.vmem [#allocation2], %s597
        %599 = vst [vmem:[%s598] sm:$0xff] %v588
        %p600 = scmp.eq.s32.totalorder %s26, 1
        // Predicated region
        $region61: #{autoencoder_forward.1} parent=59 // pred_check
          %p601 = pneg %p600
        $region62: #{autoencoder_forward.1} parent=59 // pred_check_branch
          %603 = sbr.rel (%p601) target = $region64
        $region63: #{autoencoder_forward.1} parent=59 // pred_region
          %v604 = vld [vmem:[#allocation2] sm:$0xff]
          %v605 = vld [vmem:[#allocation2 + $0x8] sm:$0xff]
          %v606 = vld [vmem:[%s0] sm:$0xff]
          %v607 = vld [vmem:[%s0 + $0x8] sm:$0xff]
          %v608 = vld [vmem:[%s1] sm:$0xff]
          %v609 = vld [vmem:[%s1 + $0x8] sm:$0xff]
          %v610 = vld [vmem:[%s2] sm:$0x1]
          %v611 = vld [vmem:[%s3] sm:$0x1]
          %vm612 = vcmask 7168
          %v613 = vsel %vm612, %v606, 0.0
          %v614 = vsel %vm612, %v607, 0.0
          %v615 = vadd.f32 %v613, %v614
          %616 = vadd.xlane.f32.xlu0 %v615
          %v617 = vpop.xlane.xlu0 %616
          %v618 = vrot.slane %v617, 4
          %v619 = vadd.f32 %v617, %v618
          %v620 = vrot.slane %v619, 2
          %v621 = vadd.f32 %v619, %v620
          %v622 = vrot.slane %v621, 1
          %v623 = vadd.f32 %v621, %v622
          %s624 = vtos %v623
          %v625 = vsel %vm612, %v608, 0.0
          %v626 = vsel %vm612, %v609, 0.0
          %v627 = vadd.f32 %v625, %v626
          %628 = vadd.xlane.f32.xlu0 %v627
          %v629 = vpop.xlane.xlu0 %628
          %v630 = vrot.slane %v629, 4
          %v631 = vadd.f32 %v629, %v630
          %v632 = vrot.slane %v631, 2
          %v633 = vadd.f32 %v631, %v632
          %v634 = vrot.slane %v633, 1
          %v635 = vadd.f32 %v633, %v634
          %s636 = vtos %v635
          %637 = vmatprep.subr.mxu0 0.0
          %638 = vmatpush1.xpose.msra.mxu0 %v604
          %639 = vmatprep.subr.mxu0 0.0
          %640 = vmatpush1.xpose.msra.mxu0 %v605
          %641 = vmatprep.subr.mxu0 0.0
          %642 = vmatpush1.xpose.msra.mxu0 0.0
          %643 = vmatprep.subr.mxu0 0.0
          %644 = vmatpush1.xpose.msra.mxu0 0.0
          %645 = vmatprep.subr.mxu0 0.0
          %646 = vmatpush1.xpose.msra.mxu0 0.0
          %647 = vmatprep.subr.mxu0 0.0
          %648 = vmatpush1.xpose.msra.mxu0 0.0
          %649 = vmatprep.subr.mxu0 0.0
          %650 = vmatpush1.xpose.msra.mxu0 0.0
          %651 = vmatprep.subr.mxu0 0.0
          %652 = vmatpush1.xpose.msra.mxu0 0.0
          %653 = vmatprep.subr.mxu0 0.0
          %654 = vmatpush1.xpose.msra.mxu0 0.0
          %655 = vmatprep.subr.mxu0 0.0
          %656 = vmatpush1.xpose.msra.mxu0 0.0
          %657 = vmatprep.subr.mxu0 0.0
          %658 = vmatpush1.xpose.msra.mxu0 0.0
          %659 = vmatprep.subr.mxu0 0.0
          %660 = vmatpush1.xpose.msra.mxu0 0.0
          %661 = vmatprep.subr.mxu0 0.0
          %662 = vmatpush1.xpose.msra.mxu0 0.0
          %663 = vmatprep.subr.mxu0 0.0
          %664 = vmatpush1.xpose.msra.mxu0 0.0
          %665 = vmatprep.subr.mxu0 0.0
          %666 = vmatpush1.xpose.msra.mxu0 0.0
          %667 = vmatprep.subr.mxu0 0.0
          %668 = vmatpush1.xpose.msra.mxu0 0.0
          %669 = vmatprep.subr.mxu0 0.0
          %670 = vmatpush1.xpose.msra.mxu0 0.0
          %671 = vmatprep.subr.mxu0 0.0
          %672 = vmatpush1.xpose.msra.mxu0 0.0
          %673 = vmatprep.subr.mxu0 0.0
          %674 = vmatpush1.xpose.msra.mxu0 0.0
          %675 = vmatprep.subr.mxu0 0.0
          %676 = vmatpush1.xpose.msra.mxu0 0.0
          %677 = vmatprep.subr.mxu0 0.0
          %678 = vmatpush1.xpose.msra.mxu0 0.0
          %679 = vmatprep.subr.mxu0 0.0
          %680 = vmatpush1.xpose.msra.mxu0 0.0
          %681 = vmatprep.subr.mxu0 0.0
          %682 = vmatpush1.xpose.msra.mxu0 0.0
          %683 = vmatprep.subr.mxu0 0.0
          %684 = vmatpush1.xpose.msra.mxu0 0.0
          %685 = vmatprep.subr.mxu0 0.0
          %686 = vmatpush1.xpose.msra.mxu0 0.0
          %687 = vmatprep.subr.mxu0 0.0
          %688 = vmatpush1.xpose.msra.mxu0 0.0
          %689 = vmatprep.subr.mxu0 0.0
          %690 = vmatpush1.xpose.msra.mxu0 0.0
          %691 = vmatprep.subr.mxu0 0.0
          %692 = vmatpush1.xpose.msra.mxu0 0.0
          %693 = vmatprep.subr.mxu0 0.0
          %694 = vmatpush1.xpose.msra.mxu0 0.0
          %695 = vmatprep.subr.mxu0 0.0
          %696 = vmatpush1.xpose.msra.mxu0 0.0
          %697 = vmatprep.subr.mxu0 0.0
          %698 = vmatpush1.xpose.msra.mxu0 0.0
          %699 = vmatprep.subr.mxu0 0.0
          %700 = vmatpush1.xpose.msra.mxu0 0.0
          %701 = vmatprep.mubr.f32.mxu0 0.0
          %702 = vmatmul.mubr.f32.gmra.mrb[0].mxu0 %v604
          %v703 = vpop.f32.mrb[0].mxu0
          %v704 = vadd.f32 0.0, %v703
          %v705 = vpop.f32.mrb[0].mxu0
          %706 = vmatprep.mubr.f32.mxu0 0.0
          %707 = vmatmul.mubr.f32.gmra.mrb[0].mxu0 %v605
          %v708 = vpop.f32.mrb[0].mxu0
          %v709 = vadd.f32 0.0, %v708
          %v710 = vpop.f32.mrb[0].mxu0
          %711 = vdwg.mxu0
          %v712 = vlaneseq
          %v713 = vshrl.u32 %v712, 7
          %v714 = vadd.s32 %v713, 8
          %v715 = vlaneseq
          %v716 = vand.u32 %v715, 127
          %vm717 = vcmp.eq.s32.totalorder %v713, %v716
          %vm718 = vcmp.eq.s32.totalorder %v714, %v716
          %v719 = vsel %vm717, %v704, 0.0
          %v720 = vsel %vm718, %v709, 0.0
          %vm721 = vcmask 130048
          %v722 = vsel %vm721, %v719, 0.0
          %723 = vadd.xlane.f32.xlu0 %v722
          %v724 = vpop.xlane.xlu0 %723
          %v725 = vsel %vm721, %v720, 0.0
          %726 = vadd.xlane.f32.xlu0 %v725
          %v727 = vpop.xlane.xlu0 %726
          %v728 = vadd.f32 %v722, %v725
          %v729 = vrot.slane %v728, 4
          %v730 = vadd.f32 %v728, %v729
          %v731 = vrot.slane %v730, 2
          %v732 = vadd.f32 %v730, %v731
          %v733 = vrot.slane %v732, 1
          %v734 = vadd.f32 %v732, %v733
          %v735 = vrsqrt.pop %v724
          %v736 = vmul.f32 %v724, %v735
          %vm737 = vcmp.eq.f32.partialorder %v724, inf
          %v738 = vsel %vm737, %v724, %v736
          %vm739 = vcmp.eq.f32.partialorder %v724, 0.0
          %v740 = vand.u32 %v724, 2147483648
          %v741 = vsel %vm739, %v740, %v738
          %v742 = vrsqrt.pop %v727
          %v743 = vmul.f32 %v727, %v742
          %vm744 = vcmp.eq.f32.partialorder %v727, inf
          %v745 = vsel %vm744, %v727, %v743
          %vm746 = vcmp.eq.f32.partialorder %v727, 0.0
          %v747 = vand.u32 %v727, 2147483648
          %v748 = vsel %vm746, %v747, %v745
          %v749 = vrsqrt.pop %v734
          %v750 = vmul.f32 %v734, %v749
          %vm751 = vcmp.eq.f32.partialorder %v734, inf
          %v752 = vsel %vm751, %v734, %v750
          %vm753 = vcmp.eq.f32.partialorder %v734, 0.0
          %v754 = vand.u32 %v734, 2147483648
          %v755 = vsel %vm753, %v754, %v752
          %v756 = vmul.f32 %v741, %v755
          %v757 = vmul.f32 %v748, %v755
          %v758 = vmax.f32 %v756, 1e-15
          %v759 = vmax.f32 %v757, 1e-15
          %v760 = vrcp.pop %v758
          %v761 = vmul.f32 %v704, %v760
          %v762 = vrcp.pop %v759
          %v763 = vmul.f32 %v709, %v762
          %v764 = vmul.f32 %v761, 1.442695
          %v765 = vpow.pop %v764
          %v766 = vmul.f32 %v763, 1.442695
          %v767 = vpow.pop %v766
          %769 = vset.pattern.permute.xlu0 0
          %770 = vperm.xlu0 %769, %v606
          %v771 = vpop.permute.xlu0 %770
          %774 = vset.pattern.permute.xlu0 0
          %775 = vperm.xlu0 %774, %v607
          %v776 = vpop.permute.xlu0 %775
          %v778 = vmul.f32 %v771, %v765
          %v779 = vmul.f32 %v776, %v767
          %v780 = vsel %vm721, %v778, 0.0
          %v781 = vsel %vm721, %v779, 0.0
          %v782 = vadd.f32 %v780, %v781
          %v783 = vrot.slane %v782, 4
          %v784 = vadd.f32 %v782, %v783
          %v785 = vrot.slane %v784, 2
          %v786 = vadd.f32 %v784, %v785
          %v787 = vrot.slane %v786, 1
          %v788 = vadd.f32 %v786, %v787
          %790 = vset.pattern.permute.xlu0 0
          %791 = vperm.xlu0 %790, %v608
          %v792 = vpop.permute.xlu0 %791
          %795 = vset.pattern.permute.xlu0 0
          %796 = vperm.xlu0 %795, %v609
          %v797 = vpop.permute.xlu0 %796
          %v799 = vmul.f32 %v792, %v765
          %v800 = vmul.f32 %v797, %v767
          %v801 = vsel %vm721, %v799, 0.0
          %v802 = vsel %vm721, %v800, 0.0
          %v803 = vadd.f32 %v801, %v802
          %v804 = vrot.slane %v803, 4
          %v805 = vadd.f32 %v803, %v804
          %v806 = vrot.slane %v805, 2
          %v807 = vadd.f32 %v805, %v806
          %v808 = vrot.slane %v807, 1
          %v809 = vadd.f32 %v807, %v808
          %v810 = vmul.f32 %v788, %v610
          %vm811 = vcmask 122880
          %v812 = vsel %vm811, %v810, 0.0
          %813 = vadd.xlane.f32.xlu0 %v812
          %v814 = vpop.xlane.xlu0 %813
          %v815 = vrot.slane %v814, 4
          %v816 = vadd.f32 %v814, %v815
          %v817 = vrot.slane %v816, 2
          %v818 = vadd.f32 %v816, %v817
          %v819 = vrot.slane %v818, 1
          %v820 = vadd.f32 %v818, %v819
          %s821 = vtos %v820
          %v822 = vmul.f32 %v809, %v611
          %v823 = vsel %vm811, %v822, 0.0
          %824 = vadd.xlane.f32.xlu0 %v823
          %v825 = vpop.xlane.xlu0 %824
          %v826 = vrot.slane %v825, 4
          %v827 = vadd.f32 %v825, %v826
          %v828 = vrot.slane %v827, 2
          %v829 = vadd.f32 %v827, %v828
          %v830 = vrot.slane %v829, 1
          %v831 = vadd.f32 %v829, %v830
          %s832 = vtos %v831
          %s833 = sadd.f32 %s821, %s832
          %s834 = smax.f32 %s624, 1.0
          %s835 = smax.f32 %s636, 1.0
          %v836 = vstv %s834
          %v837 = vrcp.pop %v836
          %v838 = vmul.f32 %v788, %v837
          %s839 = sadd.f32 %s833, 0.0
          %v840 = vstv %s839
          %v841 = vrcp.pop %v840
          %v842 = vmul.f32 %v838, %v841
          %v843 = vlog2.pop %v842
          %v844 = vmul.f32 %v843, 0.6931472
          %v845 = vmul.f32 %v844, %v611
          %v846 = vsel %vm811, %v845, 0.0
          %847 = vadd.xlane.f32.xlu0 %v846
          %v848 = vpop.xlane.xlu0 %847
          %v849 = vrot.slane %v848, 4
          %v850 = vadd.f32 %v848, %v849
          %v851 = vrot.slane %v850, 2
          %v852 = vadd.f32 %v850, %v851
          %v853 = vrot.slane %v852, 1
          %v854 = vadd.f32 %v852, %v853
          %s855 = vtos %v854
          %s856 = ssub.f32 0.0, %s855
          %v857 = vstv %s835
          %v858 = vrcp.pop %v857
          %s859 = vtos %v858
          %s860 = smul.f32 %s856, %s859
          %s861 = smul.f32 %s624, %s624
          %s862 = smax.f32 %s861, 1.0
          %v863 = vstv %s862
          %v864 = vrcp.pop %v863
          %s865 = vtos %v864
          %s866 = smul.f32 %s821, %s865
          %s867 = smul.f32 %s636, %s636
          %s868 = smax.f32 %s867, 1.0
          %v869 = vstv %s868
          %v870 = vrcp.pop %v869
          %s871 = vtos %v870
          %s872 = smul.f32 %s832, %s871
          %s873 = sadd.f32 %s866, %s872
          %v874 = vstv %s873
          %v875 = vrcp.pop %v874
          %s876 = vtos %v875
          %s877 = smul.f32 %s866, %s876
          %p878 = scmp.eq.f32.partialorder %s624, 0.0
          %p879 = scmp.eq.f32.partialorder %s636, 0.0
          %p880 = por %p878, %p879
          %s881 = scalar_select %p880, 0.0, %s860
          %s882 = smul.f32 %s881, 0.5
          %s883 = scalar_select %p880, 0.0, %s877
          %vm884 = vcmp.eq.s32.totalorder %v716, 0
          %vm885 = vcmp.eq.s32.totalorder %v716, 1
          %v886 = vstv %s883
          %v887 = vsel %vm885, %v886, 0.0
          %v888 = vstv %s882
          %v889 = vsel %vm884, %v888, %v887
          %890 = vst [vmem:[%s11] sm:$0x1] %v889
        $region64: #{autoencoder_forward.1} parent=59 // pred_fallthru
          _
        %s891 = sand.u32 %s249, 1
        %s892 = scalar_lea.sflag [#allocation4], %s891
        %s893 = sand.u32 %s249, 1
        %s894 = smul.addr %s893, 8
        %s895 = scalar_lea.vmem [#allocation3], %s894
        // Predicated region
        $region65: #{autoencoder_forward.1} parent=59 // pred_check
          %p896 = pneg %p259
        $region66: #{autoencoder_forward.1} parent=59 // pred_check_branch
          %898 = sbr.rel (%p896) target = $region68
        $region67: #{autoencoder_forward.1} parent=59 // pred_region
          %s900 = ssub.s32 128, 128
          %901 = vsyncadd %s892, %s900
          %s902 = smul.addr %s26, 128
          %s903 = scalar_lea.hbm %s10, %s902
          %s905 = sshll.u32 %s895, 4
          %s906 = int_to_ptr.vmem [resolvable:$true] %s905
          %908 = dma.vmem_to_hbm [thread:$0]  %s906, 128, %s903, %s892
        $region68: #{autoencoder_forward.1} parent=59 // pred_fallthru
          _
        // Predicated region
        $region69: #{autoencoder_forward.1} parent=59 // pred_check
          %p909 = pneg %p280
        $region70: #{autoencoder_forward.1} parent=59 // pred_check_branch
          %911 = sbr.rel (%p909) target = $region72
        $region71: #{autoencoder_forward.1} parent=59 // pred_region
          _
        $region72: #{autoencoder_forward.1} parent=59 // pred_fallthru
          _
        // Predicated region
        $region73: #{autoencoder_forward.1} parent=59 // pred_check
          %p912 = pneg %p280
        $region74: #{autoencoder_forward.1} parent=59 // pred_check_branch
          %914 = sbr.rel (%p912) target = $region76
        $region75: #{autoencoder_forward.1} parent=59 // pred_region
          _
        $region76: #{autoencoder_forward.1} parent=59 // pred_fallthru
          _
      $region60: #{autoencoder_forward.1} parent=5 // pred_fallthru
        _
      %p915 = scmp.le.s32.totalorder 2, %s21
      // Predicated region
      $region77: #{autoencoder_forward.1} parent=5 // pred_check
        %p916 = pneg %p915
      $region78: #{autoencoder_forward.1} parent=5 // pred_check_branch
        %918 = sbr.rel (%p916) target = $region80
      $region79: #{autoencoder_forward.1} parent=5 // pred_region
        %s919 = ssub.s32 %s21, 2
        // Predicated region
        $region81: #{autoencoder_forward.1} parent=79 // pred_check
          %p920 = pneg %p265
        $region82: #{autoencoder_forward.1} parent=79 // pred_check_branch
          %922 = sbr.rel (%p920) target = $region84
        $region83: #{autoencoder_forward.1} parent=79 // pred_region
          %s923 = sand.u32 %s250, 1
          %s924 = scalar_lea.sflag [#allocation4], %s923
          %s925 = sand.u32 %s250, 1
          %s926 = smul.addr %s925, 8
          %s927 = scalar_lea.vmem [#allocation3], %s926
          %928 = dma.done %s924, 128
        $region84: #{autoencoder_forward.1} parent=79 // pred_fallthru
          _
      $region80: #{autoencoder_forward.1} parent=5 // pred_fallthru
        _
    $region6: #{autoencoder_forward.1} parent=1 // loop_footer
      %s25 = sadd.s32 1, %s21
    $region7: #{autoencoder_forward.1} parent=1 // loop_footer_branch
      %20 = sbr.rel target = $region3
    $region8: #{autoencoder_forward.1} parent=1 // loop_exit
      _
    %929 = vsyncpa [#allocation4], 1
    %s930 = scalar_lea.sflag [#allocation4], 1
    %931 = vsyncpa %s930, 1

</llo_original>
